<compile_context>
chip_gen: v7x
topology: tpu7x:2x2x1
jax: 0.10.0
libtpu: 0.0.40
codegen_flags: <defaults>
</compile_context>

<pallas_src>
import jax
import jax.numpy as jnp
from jax.experimental import pallas as pl
from jax.experimental.pallas import tpu as pltpu


# ----------------------------------------------------------------------------
# Kernels
# ----------------------------------------------------------------------------
def _cls_linear_kernel(x_ref, w_ref, o_ref):
    # x_ref: [TB, K*d_model]   batch tile
    # w_ref: [1,  K*d_model]   resident weight
    # o_ref: [TB, 1]
    x = x_ref[...]
    w = w_ref[...]
    # VPU multiply + lane reduction (matvec with N=1: skip the MXU / w.T relayout)
    o_ref[...] = jnp.sum(x * w, axis=-1, keepdims=True).astype(o_ref.dtype)


def _cls_max_kernel(x_ref, w_ref, o_ref):
    # x_ref: [TB, K, d_model]  batch tile
    # w_ref: [1,  d_model]     resident weight
    # o_ref: [TB, 1]
    x = x_ref[...]
    pooled = jnp.max(x, axis=1)              # torch.max(..., dim=1)[0]
    w = w_ref[...]
    o_ref[...] = jnp.sum(pooled * w, axis=-1, keepdims=True).astype(o_ref.dtype)


# ----------------------------------------------------------------------------
# Helpers
# ----------------------------------------------------------------------------
def _round_up(x, m):
    return ((x + m - 1) // m) * m


def _pick_batch_tile(bs, row_elems, bytes_per_elem, target_tile_bytes=4 << 20):
    """Batch tile: ~4 MiB of input per grid step, multiple of 8, <= padded bs."""
    tb = max(8, target_tile_bytes // max(1, row_elems * bytes_per_elem))
    tb = (tb // 8) * 8
    tb = min(tb, 1024)
    tb = min(tb, _round_up(bs, 8))
    return max(8, tb)


# ----------------------------------------------------------------------------
# Wrapper (matches Classifier.forward)
# ----------------------------------------------------------------------------
def classifier_forward(Mp_cls, weight, method, *, use_pallas=None):
    """
    Args:
      Mp_cls: [bs, K, d_model] float32
      weight: [1, K*d_model] if method == 'linear', [1, d_model] if method == 'max'
      method: 'linear' | 'max'
      use_pallas: force/skip the Pallas path (None = auto by size)
    Returns:
      cls_scores: [bs] float32
    """
    bs, K, d_model = Mp_cls.shape

    if use_pallas is None:
        # At ~KB-scale inputs the pallas_call fixed overhead dominates; let XLA
        # handle tiny shapes.
        use_pallas = Mp_cls.size >= (1 << 16)

    if not use_pallas:
        if method == 'linear':
            return (Mp_cls.reshape(bs, K * d_model) @ weight.T)[:, 0]
        elif method == 'max':
            return (jnp.max(Mp_cls, axis=1) @ weight.T)[:, 0]
        else:
            raise ValueError(f"unknown method: {method}")

    bytes_per_elem = jnp.dtype(Mp_cls.dtype).itemsize

    if method == 'linear':
        feat = K * d_model
        x = Mp_cls.reshape(bs, feat)                     # glue reshape in plain JAX
        TB = _pick_batch_tile(bs, feat, bytes_per_elem)
        bs_pad = _round_up(bs, TB)
        if bs_pad != bs:
            x = jnp.pad(x, ((0, bs_pad - bs), (0, 0)))   # padded rows -> score 0, sliced off
        grid = (bs_pad // TB,)

        out = pl.pallas_call(
            _cls_linear_kernel,
            out_shape=jax.ShapeDtypeStruct((bs_pad, 1), jnp.float32),
            grid_spec=pl.GridSpec(
                grid=grid,
                in_specs=[
                    pl.BlockSpec((TB, feat), lambda i: (i, 0)),     # batch-tiled input
                    pl.BlockSpec((1, feat), lambda i: (0, 0)),      # weight: DMA'd once
                ],
                out_specs=pl.BlockSpec((TB, 1), lambda i: (i, 0)),
            ),
            compiler_params=pltpu.CompilerParams(
                dimension_semantics=("parallel",),
                vmem_limit_bytes=32 * 1024 * 1024,
            ),
        )(x, weight)

    elif method == 'max':
        x = Mp_cls
        TB = _pick_batch_tile(bs, K * d_model, bytes_per_elem)
        bs_pad = _round_up(bs, TB)
        if bs_pad != bs:
            x = jnp.pad(x, ((0, bs_pad - bs), (0, 0), (0, 0)))
        grid = (bs_pad // TB,)

        out = pl.pallas_call(
            _cls_max_kernel,
            out_shape=jax.ShapeDtypeStruct((bs_pad, 1), jnp.float32),
            grid_spec=pl.GridSpec(
                grid=grid,
                in_specs=[
                    pl.BlockSpec((TB, K, d_model), lambda i: (i, 0, 0)),  # batch-tiled input
                    pl.BlockSpec((1, d_model), lambda i: (0, 0)),         # weight: DMA'd once
                ],
                out_specs=pl.BlockSpec((TB, 1), lambda i: (i, 0)),
            ),
            compiler_params=pltpu.CompilerParams(
                dimension_semantics=("parallel",),
                vmem_limit_bytes=32 * 1024 * 1024,
            ),
        )(x, weight)

    else:
        raise ValueError(f"unknown method: {method}")

    return out[:bs, 0]                                    # drop padding, squeeze(-1) -> [bs]


# ----------------------------------------------------------------------------
# Main
# ----------------------------------------------------------------------------
if __name__ == "__main__":
    # Small shapes consistent with the module: bs=2, K=4 passages, d_model=32
    bs, K, d_model = 2, 4, 32

    key = jax.random.PRNGKey(0)
    k_x, k_wl, k_wm = jax.random.split(key, 3)

    Mp_cls = jax.random.normal(k_x, (bs, K, d_model), dtype=jnp.float32)

    # Deterministic weight init (uniform, roughly matching nn.Linear default scale)
    bound_lin = 1.0 / jnp.sqrt(K * d_model)
    w_linear = jax.random.uniform(k_wl, (1, K * d_model), dtype=jnp.float32,
                                  minval=-bound_lin, maxval=bound_lin)
    bound_max = 1.0 / jnp.sqrt(d_model)
    w_max = jax.random.uniform(k_wm, (1, d_model), dtype=jnp.float32,
                               minval=-bound_max, maxval=bound_max)

    # --- method = 'linear' (force the Pallas path to exercise the kernel) ---
    scores_linear = jax.block_until_ready(
        classifier_forward(Mp_cls, w_linear, 'linear', use_pallas=True))
    ref_linear = (Mp_cls.reshape(bs, K * d_model) @ w_linear.T)[:, 0]
    assert scores_linear.shape == (bs,)
    assert jnp.allclose(scores_linear, ref_linear, atol=1e-5, rtol=1e-5)

    # --- method = 'max' ---
    scores_max = jax.block_until_ready(
        classifier_forward(Mp_cls, w_max, 'max', use_pallas=True))
    ref_max = (jnp.max(Mp_cls, axis=1) @ w_max.T)[:, 0]
    assert scores_max.shape == (bs,)
    assert jnp.allclose(scores_max, ref_max, atol=1e-5, rtol=1e-5)

    print("KERNEL_OK")
</pallas_src>

<mosaic_0001>
module attributes {stable_mosaic.version = 11 : i64} {
  func.func @_cls_linear_kernel(%arg0: i32, %arg1: memref<8x128xf32, #tpu.memory_space<vmem>>, %arg2: memref<1x128xf32, #tpu.memory_space<vmem>>, %arg3: memref<8x1xf32, #tpu.memory_space<vmem>>) attributes {dimension_semantics = [#tpu.dimension_semantics<parallel>], iteration_bounds = array<i64: 1>, scalar_prefetch = 0 : i64, scratch_operands = 0 : i64, tpu.core_type = #tpu.core_type<tc>, window_params = [{transform_indices = @transform_0, window_bounds = array<i64: 8, 128>}, {pipeline_mode = #tpu.pipeline_mode<synchronous>, transform_indices = @transform_1, window_bounds = array<i64: 1, 128>}, {transform_indices = @transform_2, window_bounds = array<i64: 8, 1>}]} {
    %c0 = arith.constant 0 : index
    %c0_0 = arith.constant 0 : index
    %0 = vector.load %arg1[%c0, %c0_0] : memref<8x128xf32, #tpu.memory_space<vmem>>, vector<8x128xf32>
    %c0_1 = arith.constant 0 : index
    %c0_2 = arith.constant 0 : index
    %1 = vector.load %arg2[%c0_1, %c0_2] : memref<1x128xf32, #tpu.memory_space<vmem>>, vector<1x128xf32>
    %2 = vector.broadcast %1 : vector<1x128xf32> to vector<8x128xf32>
    %3 = arith.mulf %0, %2 : vector<8x128xf32>
    %cst = arith.constant dense<0.000000e+00> : vector<8xf32>
    %4 = vector.multi_reduction <add>, %3, %cst [1] : vector<8x128xf32> to vector<8xf32>
    %5 = vector.shape_cast %4 : vector<8xf32> to vector<8x1xf32>
    %c0_3 = arith.constant 0 : index
    %c0_4 = arith.constant 0 : index
    %6 = vector.load %arg3[%c0_3, %c0_4] : memref<8x1xf32, #tpu.memory_space<vmem>>, vector<8x1xf32>
    tpu.vector_store %arg3[%c0_3, %c0_4], %5 {strides = array<i32>} : memref<8x1xf32, #tpu.memory_space<vmem>>, vector<8x1xf32>,
    return
  }
  func.func @transform_0(%arg0: i32) -> (i32, i32) {
    %c0_i32 = arith.constant 0 : i32
    %c0_i32_0 = arith.constant 0 : i32
    return %arg0, %c0_i32 : i32, i32
  }
  func.func @transform_1(%arg0: i32) -> (i32, i32) {
    %c0_i32 = arith.constant 0 : i32
    %c0_i32_0 = arith.constant 0 : i32
    %c0_i32_1 = arith.constant 0 : i32
    return %c0_i32, %c0_i32_0 : i32, i32
  }
  func.func @transform_2(%arg0: i32) -> (i32, i32) {
    %c0_i32 = arith.constant 0 : i32
    %c0_i32_0 = arith.constant 0 : i32
    return %arg0, %c0_i32 : i32, i32
  }
}

</mosaic_0001>

<llo_original>
// kernel: tpu_custom_call.1
$region0: #{tpu_custom_call.1}
  #allocation0 [shape = 'u32[]', space=smem, size = 0x4, offset = 0x4, fixed_abs, tag = 'smem constant byte address 0x4 - core index']
  #allocation1 [shape = 'u32[144,128]{1,0:T(1,128)}', space=vmem, size = 0x12000, scoped, tag = 'internal scratch']
  %s0 = inlined_call_operand.hbm [shape: f32[8,128], index: 0, kind: input, shape index: {}]
  %s1 = inlined_call_operand.vmem [shape: f32[1,128], index: 1, kind: input, shape index: {}]
  %s2 = inlined_call_operand.vmem [shape: f32[8,1], index: 2, kind: output, shape index: {}]
  %s3 = sld [smem:[#allocation0]]
  $region22: #{tpu_custom_call.1} parent=0
    _
  %s5 = ssub.s32 1, %s3
  %s6 = scalar_select 0, %s5, %s3
  $region1: #{tpu_custom_call.1} parent=0
    #allocation2 [shape = 'u8[4096]{0}', space=vmem, size = 0x1000, scoped, tag = 'input window, operand 0, single buffered']
    #allocation3 [shape = 's32[1]{0}', space=sflag, size = 0x4, scoped, tag = 'scoped memory for tpu_custom_call.1']
    %7 = vsyncpa [#allocation3], 0
    // Predicated region
    $region2: #{tpu_custom_call.1} parent=1 // pred_check
      _
    $region3: #{tpu_custom_call.1} parent=1 // pred_check_branch
      %9 = sbr.rel (0) target = $region5
    $region4: #{tpu_custom_call.1} parent=1 // pred_region
      %s11 = ssub.s32 128, 128
      %12 = vsyncadd [#allocation3], %s11
      %s14 = sshll.u32 [#allocation2], 4
      %s15 = int_to_ptr.vmem [resolvable:$true] %s14
      %17 = dma.hbm_to_vmem [thread:$0]  %s0, 128, %s15, [#allocation3]
    $region5: #{tpu_custom_call.1} parent=1 // pred_fallthru
      _
    // Predicated region
    $region6: #{tpu_custom_call.1} parent=1 // pred_check
      _
    $region7: #{tpu_custom_call.1} parent=1 // pred_check_branch
      %19 = sbr.rel (0) target = $region9
    $region8: #{tpu_custom_call.1} parent=1 // pred_region
      _
    $region9: #{tpu_custom_call.1} parent=1 // pred_fallthru
      _
    // Predicated region
    $region10: #{tpu_custom_call.1} parent=1 // pred_check
      _
    $region11: #{tpu_custom_call.1} parent=1 // pred_check_branch
      %21 = sbr.rel (0) target = $region13
    $region12: #{tpu_custom_call.1} parent=1 // pred_region
      %22 = dma.done [#allocation3], 128
    $region13: #{tpu_custom_call.1} parent=1 // pred_fallthru
      _
    %v23 = vld [vmem:[#allocation2] sm:$0xff]
    %v24 = vld [vmem:[%s1] sm:$0x1]
    %v26 = vlaneseq
    %v27 = vshrl.u32 %v26, 7
    %v28 = vsub.s32 0, %v27
    %v29 = vrot.slane %v24, %v28
    %v31 = vmul.f32 %v23, %v29
    %32 = vadd.xlane.f32.xlu0 %v31
    %v33 = vpop.xlane.xlu0 %32
    %vm34 = vcmask 7168
    %35 = vst.msk [vmem:[%s2] sm:$0xff] %vm34, %v33
    // Predicated region
    $region14: #{tpu_custom_call.1} parent=1 // pred_check
      _
    $region15: #{tpu_custom_call.1} parent=1 // pred_check_branch
      %37 = sbr.rel (0) target = $region17
    $region16: #{tpu_custom_call.1} parent=1 // pred_region
      _
    $region17: #{tpu_custom_call.1} parent=1 // pred_fallthru
      _
    // Predicated region
    $region18: #{tpu_custom_call.1} parent=1 // pred_check
      _
    $region19: #{tpu_custom_call.1} parent=1 // pred_check_branch
      %39 = sbr.rel (0) target = $region21
    $region20: #{tpu_custom_call.1} parent=1 // pred_region
      _
    $region21: #{tpu_custom_call.1} parent=1 // pred_fallthru
      _
    %40 = vsyncpa [#allocation3], 1

</llo_original>
